<compile_context>
chip_gen: v7x
topology: tpu7x:2x2x1
jax: 0.10.0
libtpu: 0.0.40
codegen_flags: <defaults>
</compile_context>

<pallas_src>
import jax
import jax.numpy as jnp
from jax import lax
from jax.experimental import pallas as pl
from jax.experimental.pallas import tpu as pltpu


def event_mlp_kernel(emb_ref, s_ref, e_ref, w1_ref, w2_ref, b_ref, out_ref):
    """One grid step = TB batch rows.

    emb_ref : VMEM f32  [TB*S, E]  flattened sentence embeddings of this block
    s_ref   : VMEM i32  [2*TB, 1]  span starts, flattened-local coordinates
                                   (rows 0..TB-1 = span1, TB..2TB-1 = span2)
    e_ref   : VMEM i32  [2*TB, 1]  span ends (exclusive), same layout
    w1_ref  : VMEM f32  [E, Mp]    W[:, :E]^T  (output dim padded to Mp lanes)
    w2_ref  : VMEM f32  [E, Mp]    W[:, E:]^T
    b_ref   : VMEM f32  [1, Mp]    bias (padded)
    out_ref : VMEM f32  [TB, Mp]
    """
    TBS, E = emb_ref.shape
    TB = s_ref.shape[0] // 2

    starts = s_ref[...]                                           # (2*TB, 1)
    ends = e_ref[...]                                             # (2*TB, 1)
    # NOTE: zero-length spans produce inf/nan, matching the PyTorch reference.
    inv_len = 1.0 / (ends - starts).astype(jnp.float32)           # (2*TB, 1)

    # Block-diagonal pooling weights: row r is 1/span_len inside its span's
    # flattened column range, 0 elsewhere (one iota + lane-broadcast compares).
    col = lax.broadcasted_iota(jnp.int32, (2 * TB, TBS), 1)       # column idx
    wpool = jnp.where((col >= starts) & (col < ends), inv_len, 0.0)

    # Span-mean pooling on the MXU: (2*TB, TB*S) @ (TB*S, E) -> (2*TB, E).
    pooled = jnp.dot(wpool, emb_ref[...], preferred_element_type=jnp.float32)
    p1 = pooled[:TB]                                              # span-1 means
    p2 = pooled[TB:]                                              # span-2 means

    # concat([e1, e2]) @ W^T + b  ==  e1 @ W[:, :E]^T + e2 @ W[:, E:]^T + b
    out_ref[...] = (
        jnp.dot(p1, w1_ref[...], preferred_element_type=jnp.float32)
        + jnp.dot(p2, w2_ref[...], preferred_element_type=jnp.float32)
        + b_ref[...])                                             # (TB, Mp)


def base_forward(sent_emb, batch_e, mlp_w, mlp_b, *, tb=None):
    """sent_emb: [B, S, E] f32 (RoBERTa last_hidden_state stand-in)
       batch_e : [B, 4] i32 = (e1_start, e1_end, e2_start, e2_end), end exclusive
       mlp_w   : [M, 2E] f32 (torch nn.Linear layout), mlp_b: [M] f32
       Returns prediction [B, M] f32.

       tb = batch rows per grid step (multiple of 8). Auto-chosen if None so
       the double-buffered embedding block stays within ~8 MiB of VMEM.
    """
    B, S, E = sent_emb.shape
    M, two_e = mlp_w.shape
    assert two_e == 2 * E, "mlp_w must be [M, 2*E]"

    Mp = -(-M // 128) * 128            # lane-dense output width
    b8 = -(-B // 8) * 8

    if tb is None:
        budget = 8 << 20               # bytes for the double-buffered emb block
        tb = (budget // (2 * S * E * 4)) // 8 * 8
        tb = min(tb, b8)
    TB = max(8, (int(tb) // 8) * 8)

    Bp = -(-B // TB) * TB
    nblk = Bp // TB

    # --- pad batch dimension to a multiple of TB -----------------------------
    x = jnp.asarray(sent_emb, jnp.float32)
    be = jnp.asarray(batch_e, jnp.int32)
    if Bp > B:
        x = jnp.concatenate([x, jnp.zeros((Bp - B, S, E), jnp.float32)], axis=0)
        # Dummy spans [0,1) on padded rows avoid divide-by-zero; padded rows
        # are sliced off the output anyway.
        dummy = jnp.tile(jnp.array([[0, 1, 0, 1]], jnp.int32), (Bp - B, 1))
        be = jnp.concatenate([be, dummy], axis=0)

    # Flatten (Bp, S, E) -> (Bp*S, E): contiguous relabel, so each grid step
    # DMAs one plain 2-D (TB*S, E) tile.
    x_flat = x.reshape(Bp * S, E)

    # --- span starts/ends in flattened-local (row-within-block * S) coords ---
    local_off = (jnp.arange(Bp, dtype=jnp.int32) % TB) * S        # (Bp,)
    s1 = be[:, 0] + local_off
    e1 = be[:, 1] + local_off
    s2 = be[:, 2] + local_off
    e2 = be[:, 3] + local_off
    # Per-block ordering: first TB rows = span-1, next TB rows = span-2.
    starts = jnp.stack([s1.reshape(nblk, TB), s2.reshape(nblk, TB)], axis=1)
    starts = starts.reshape(nblk * 2 * TB, 1)
    ends = jnp.stack([e1.reshape(nblk, TB), e2.reshape(nblk, TB)], axis=1)
    ends = ends.reshape(nblk * 2 * TB, 1)

    # --- MLP params: pad M to Mp lanes, split + transpose once (outside grid)
    w = jnp.pad(jnp.asarray(mlp_w, jnp.float32), ((0, Mp - M), (0, 0)))  # (Mp, 2E)
    wt1 = w[:, :E].T                                                     # (E, Mp)
    wt2 = w[:, E:].T                                                     # (E, Mp)
    bias = jnp.pad(jnp.asarray(mlp_b, jnp.float32), (0, Mp - M)).reshape(1, Mp)

    # VMEM budget: double-buffered inputs/outputs + in-kernel pooling transients.
    vmem_bytes = (2 * TB * S * E * 4            # emb block (double-buffered)
                  + 2 * 2 * E * Mp * 4          # two resident weight inputs
                  + 4 * 2 * TB * TB * S * 4     # iota / mask / wpool transients
                  + 2 * TB * Mp * 4             # output block
                  + (2 << 20))                  # headroom
    vmem_limit = int(min(64 << 20, max(32 << 20, vmem_bytes)))

    out = pl.pallas_call(
        event_mlp_kernel,
        out_shape=jax.ShapeDtypeStruct((Bp, Mp), jnp.float32),
        grid=(nblk,),
        in_specs=[
            pl.BlockSpec((TB * S, E), lambda i: (i, 0)),       # sent_emb block
            pl.BlockSpec((2 * TB, 1), lambda i: (i, 0)),       # starts
            pl.BlockSpec((2 * TB, 1), lambda i: (i, 0)),       # ends
            pl.BlockSpec((E, Mp), lambda i: (0, 0)),           # W1^T (resident)
            pl.BlockSpec((E, Mp), lambda i: (0, 0)),           # W2^T (resident)
            pl.BlockSpec((1, Mp), lambda i: (0, 0)),           # bias (resident)
        ],
        out_specs=pl.BlockSpec((TB, Mp), lambda i: (i, 0)),
        compiler_params=pltpu.CompilerParams(
            dimension_semantics=("parallel",),
            vmem_limit_bytes=vmem_limit),
    )(x_flat, starts, ends, wt1, wt2, bias)

    return out[:B, :M]


def _reference(sent_emb, batch_e, mlp_w, mlp_b):
    """Pure-JAX reference mirroring the PyTorch code."""
    outs = []
    for i in range(sent_emb.shape[0]):
        s1, e1, s2, e2 = [int(v) for v in batch_e[i]]
        e1_emb = jnp.mean(sent_emb[i, s1:e1], axis=0)
        e2_emb = jnp.mean(sent_emb[i, s2:e2], axis=0)
        pair = jnp.concatenate([e1_emb, e2_emb])
        outs.append(pair @ mlp_w.T + mlp_b)
    return jnp.stack(outs)


if __name__ == "__main__":
    # Small shapes: batch=10, seq=32, embedding_size=64, mlp_size=16.
    B, S, E, M = 10, 32, 64, 16

    key = jax.random.PRNGKey(0)
    k_emb, k_w, k_b = jax.random.split(key, 3)

    # Synthetic "RoBERTa hidden states" (stand-in for roberta_model(...)[0]).
    sent_emb = jax.random.normal(k_emb, (B, S, E), dtype=jnp.float32)

    # Deterministic event index quadruples (e1_start, e1_end, e2_start, e2_end),
    # end exclusive, all within [0, S) with non-empty spans.
    batch_e = jnp.array(
        [[i % 5, (i % 5) + 2 + (i % 3), (i % 4) + 10, (i % 4) + 12 + (i % 2)]
         for i in range(B)], dtype=jnp.int32)

    # Deterministic MLP params, torch nn.Linear layout: weight [M, 2E], bias [M].
    mlp_w = jax.random.normal(k_w, (M, 2 * E), dtype=jnp.float32) * 0.02
    mlp_b = jax.random.normal(k_b, (M,), dtype=jnp.float32) * 0.02

    pred = base_forward(sent_emb, batch_e, mlp_w, mlp_b)
    pred = jax.block_until_ready(pred)

    ref = _reference(sent_emb, batch_e, mlp_w, mlp_b)
    assert pred.shape == (B, M)
    assert jnp.allclose(pred, ref, atol=1e-4, rtol=1e-4), "mismatch vs reference"

    print("KERNEL_OK")
</pallas_src>

<mosaic_0001>
module attributes {stable_mosaic.version = 11 : i64} {
  func.func @event_mlp_kernel(%arg0: i32, %arg1: memref<512x64xf32, #tpu.memory_space<vmem>>, %arg2: memref<32x1xi32, #tpu.memory_space<vmem>>, %arg3: memref<32x1xi32, #tpu.memory_space<vmem>>, %arg4: memref<64x128xf32, #tpu.memory_space<vmem>>, %arg5: memref<64x128xf32, #tpu.memory_space<vmem>>, %arg6: memref<1x128xf32, #tpu.memory_space<vmem>>, %arg7: memref<16x128xf32, #tpu.memory_space<vmem>>) attributes {dimension_semantics = [#tpu.dimension_semantics<parallel>], iteration_bounds = array<i64: 1>, scalar_prefetch = 0 : i64, scratch_operands = 0 : i64, tpu.core_type = #tpu.core_type<tc>, window_params = [{transform_indices = @transform_0, window_bounds = array<i64: 512, 64>}, {transform_indices = @transform_1, window_bounds = array<i64: 32, 1>}, {transform_indices = @transform_2, window_bounds = array<i64: 32, 1>}, {pipeline_mode = #tpu.pipeline_mode<synchronous>, transform_indices = @transform_3, window_bounds = array<i64: 64, 128>}, {pipeline_mode = #tpu.pipeline_mode<synchronous>, transform_indices = @transform_4, window_bounds = array<i64: 64, 128>}, {pipeline_mode = #tpu.pipeline_mode<synchronous>, transform_indices = @transform_5, window_bounds = array<i64: 1, 128>}, {transform_indices = @transform_6, window_bounds = array<i64: 16, 128>}]} {
    %c0 = arith.constant 0 : index
    %c0_0 = arith.constant 0 : index
    %0 = vector.load %arg2[%c0, %c0_0] : memref<32x1xi32, #tpu.memory_space<vmem>>, vector<32x1xi32>
    %c0_1 = arith.constant 0 : index
    %c0_2 = arith.constant 0 : index
    %1 = vector.load %arg3[%c0_1, %c0_2] : memref<32x1xi32, #tpu.memory_space<vmem>>, vector<32x1xi32>
    %2 = arith.subi %1, %0 : vector<32x1xi32>
    %3 = arith.sitofp %2 : vector<32x1xi32> to vector<32x1xf32>
    %cst = arith.constant 1.000000e+00 : f32
    %4 = vector.broadcast %cst : f32 to vector<32x1xf32>
    %5 = arith.divf %4, %3 : vector<32x1xf32>
    %6 = tpu.iota {dimensions = array<i32: 1>} : vector<32x512xi32>
    %7 = vector.broadcast %0 : vector<32x1xi32> to vector<32x512xi32>
    %8 = arith.cmpi sge, %6, %7 : vector<32x512xi32>
    %9 = vector.broadcast %1 : vector<32x1xi32> to vector<32x512xi32>
    %10 = arith.cmpi slt, %6, %9 : vector<32x512xi32>
    %11 = arith.andi %8, %10 : vector<32x512xi1>
    %cst_3 = arith.constant 0.000000e+00 : f32
    %12 = vector.shape_cast %5 : vector<32x1xf32> to vector<32x1xf32>
    %13 = vector.broadcast %12 : vector<32x1xf32> to vector<32x512xf32>
    %14 = vector.broadcast %cst_3 : f32 to vector<32x512xf32>
    %15 = arith.select %11, %13, %14 : vector<32x512xi1>, vector<32x512xf32>
    %c0_4 = arith.constant 0 : index
    %c0_5 = arith.constant 0 : index
    %16 = vector.load %arg1[%c0_4, %c0_5] : memref<512x64xf32, #tpu.memory_space<vmem>>, vector<512x64xf32>
    %cst_6 = arith.constant dense<0.000000e+00> : vector<32x64xf32>
    %17 = tpu.matmul %15, %16, %cst_6 {dimension_numbers = #tpu.dot_dimension_numbers<[1], [0], [0], [1], [0, 0, 1, 1], [], []>} : vector<32x512xf32>, vector<512x64xf32>, vector<32x64xf32> -> vector<32x64xf32>
    %18 = vector.extract_strided_slice %17 {offsets = [0, 0], sizes = [16, 64], strides = [1, 1]} : vector<32x64xf32> to vector<16x64xf32>
    %19 = vector.extract_strided_slice %17 {offsets = [16, 0], sizes = [16, 64], strides = [1, 1]} : vector<32x64xf32> to vector<16x64xf32>
    %c0_7 = arith.constant 0 : index
    %c0_8 = arith.constant 0 : index
    %20 = vector.load %arg4[%c0_7, %c0_8] : memref<64x128xf32, #tpu.memory_space<vmem>>, vector<64x128xf32>
    %cst_9 = arith.constant dense<0.000000e+00> : vector<16x128xf32>
    %21 = tpu.matmul %18, %20, %cst_9 {dimension_numbers = #tpu.dot_dimension_numbers<[1], [0], [0], [1], [0, 0, 1, 1], [], []>} : vector<16x64xf32>, vector<64x128xf32>, vector<16x128xf32> -> vector<16x128xf32>
    %c0_10 = arith.constant 0 : index
    %c0_11 = arith.constant 0 : index
    %22 = vector.load %arg5[%c0_10, %c0_11] : memref<64x128xf32, #tpu.memory_space<vmem>>, vector<64x128xf32>
    %cst_12 = arith.constant dense<0.000000e+00> : vector<16x128xf32>
    %23 = tpu.matmul %19, %22, %cst_12 {dimension_numbers = #tpu.dot_dimension_numbers<[1], [0], [0], [1], [0, 0, 1, 1], [], []>} : vector<16x64xf32>, vector<64x128xf32>, vector<16x128xf32> -> vector<16x128xf32>
    %24 = arith.addf %21, %23 : vector<16x128xf32>
    %c0_13 = arith.constant 0 : index
    %c0_14 = arith.constant 0 : index
    %25 = vector.load %arg6[%c0_13, %c0_14] : memref<1x128xf32, #tpu.memory_space<vmem>>, vector<1x128xf32>
    %26 = vector.broadcast %25 : vector<1x128xf32> to vector<16x128xf32>
    %27 = arith.addf %24, %26 : vector<16x128xf32>
    %c0_15 = arith.constant 0 : index
    %c0_16 = arith.constant 0 : index
    %28 = vector.load %arg7[%c0_15, %c0_16] : memref<16x128xf32, #tpu.memory_space<vmem>>, vector<16x128xf32>
    tpu.vector_store %arg7[%c0_15, %c0_16], %27 {strides = array<i32>} : memref<16x128xf32, #tpu.memory_space<vmem>>, vector<16x128xf32>,
    return
  }
  func.func @transform_0(%arg0: i32) -> (i32, i32) {
    %c0_i32 = arith.constant 0 : i32
    %c0_i32_0 = arith.constant 0 : i32
    return %arg0, %c0_i32 : i32, i32
  }
  func.func @transform_1(%arg0: i32) -> (i32, i32) {
    %c0_i32 = arith.constant 0 : i32
    %c0_i32_0 = arith.constant 0 : i32
    return %arg0, %c0_i32 : i32, i32
  }
  func.func @transform_2(%arg0: i32) -> (i32, i32) {
    %c0_i32 = arith.constant 0 : i32
    %c0_i32_0 = arith.constant 0 : i32
    return %arg0, %c0_i32 : i32, i32
  }
  func.func @transform_3(%arg0: i32) -> (i32, i32) {
    %c0_i32 = arith.constant 0 : i32
    %c0_i32_0 = arith.constant 0 : i32
    %c0_i32_1 = arith.constant 0 : i32
    return %c0_i32, %c0_i32_0 : i32, i32
  }
  func.func @transform_4(%arg0: i32) -> (i32, i32) {
    %c0_i32 = arith.constant 0 : i32
    %c0_i32_0 = arith.constant 0 : i32
    %c0_i32_1 = arith.constant 0 : i32
    return %c0_i32, %c0_i32_0 : i32, i32
  }
  func.func @transform_5(%arg0: i32) -> (i32, i32) {
    %c0_i32 = arith.constant 0 : i32
    %c0_i32_0 = arith.constant 0 : i32
    %c0_i32_1 = arith.constant 0 : i32
    return %c0_i32, %c0_i32_0 : i32, i32
  }
  func.func @transform_6(%arg0: i32) -> (i32, i32) {
    %c0_i32 = arith.constant 0 : i32
    %c0_i32_0 = arith.constant 0 : i32
    return %arg0, %c0_i32 : i32, i32
  }
}

</mosaic_0001>

<llo_original>
// kernel: tpu_custom_call.1
$region0: #{tpu_custom_call.1}
  #allocation0 [shape = 'u32[]', space=smem, size = 0x4, offset = 0x4, fixed_abs, tag = 'smem constant byte address 0x4 - core index']
  #allocation1 [shape = 'u32[144,128]{1,0:T(1,128)}', space=vmem, size = 0x12000, scoped, tag = 'internal scratch']
  %s0 = inlined_call_operand.vmem [shape: f32[512,64], index: 0, kind: input, shape index: {}]
  %s1 = inlined_call_operand.vmem [shape: s32[32,1], index: 1, kind: input, shape index: {}]
  %s2 = inlined_call_operand.vmem [shape: s32[32,1], index: 2, kind: input, shape index: {}]
  %s3 = inlined_call_operand.vmem [shape: f32[64,128], index: 3, kind: input, shape index: {}]
  %s4 = inlined_call_operand.vmem [shape: f32[64,128], index: 4, kind: input, shape index: {}]
  %s5 = inlined_call_operand.vmem [shape: f32[1,128], index: 5, kind: input, shape index: {}]
  %s6 = inlined_call_operand.hbm [shape: f32[16,128], index: 6, kind: output, shape index: {}]
  %s7 = sld [smem:[#allocation0]]
  $region34: #{tpu_custom_call.1} parent=0
    _
  %s9 = ssub.s32 1, %s7
  %s10 = scalar_select 0, %s9, %s7
  $region1: #{tpu_custom_call.1} parent=0
    #allocation2 [shape = 'u8[8192]{0}', space=vmem, size = 0x2000, scoped, tag = 'output window, operand 0, single buffered']
    #allocation3 [shape = 's32[1]{0}', space=sflag, size = 0x4, scoped, tag = 'scoped memory for tpu_custom_call.1']
    %11 = vsyncpa [#allocation3], 0
    // Predicated region
    $region2: #{tpu_custom_call.1} parent=1 // pred_check
      _
    $region3: #{tpu_custom_call.1} parent=1 // pred_check_branch
      %13 = sbr.rel (0) target = $region5
    $region4: #{tpu_custom_call.1} parent=1 // pred_region
      _
    $region5: #{tpu_custom_call.1} parent=1 // pred_fallthru
      _
    // Predicated region
    $region6: #{tpu_custom_call.1} parent=1 // pred_check
      _
    $region7: #{tpu_custom_call.1} parent=1 // pred_check_branch
      %15 = sbr.rel (0) target = $region9
    $region8: #{tpu_custom_call.1} parent=1 // pred_region
      _
    $region9: #{tpu_custom_call.1} parent=1 // pred_fallthru
      _
    // Predicated region
    $region10: #{tpu_custom_call.1} parent=1 // pred_check
      _
    $region11: #{tpu_custom_call.1} parent=1 // pred_check_branch
      %17 = sbr.rel (0) target = $region13
    $region12: #{tpu_custom_call.1} parent=1 // pred_region
      _
    $region13: #{tpu_custom_call.1} parent=1 // pred_fallthru
      _
    // Predicated region
    $region14: #{tpu_custom_call.1} parent=1 // pred_check
      _
    $region15: #{tpu_custom_call.1} parent=1 // pred_check_branch
      %19 = sbr.rel (0) target = $region17
    $region16: #{tpu_custom_call.1} parent=1 // pred_region
      _
    $region17: #{tpu_custom_call.1} parent=1 // pred_fallthru
      _
    // Predicated region
    $region18: #{tpu_custom_call.1} parent=1 // pred_check
      _
    $region19: #{tpu_custom_call.1} parent=1 // pred_check_branch
      %21 = sbr.rel (0) target = $region21
    $region20: #{tpu_custom_call.1} parent=1 // pred_region
      _
    $region21: #{tpu_custom_call.1} parent=1 // pred_fallthru
      _
    // Predicated region
    $region22: #{tpu_custom_call.1} parent=1 // pred_check
      _
    $region23: #{tpu_custom_call.1} parent=1 // pred_check_branch
      %23 = sbr.rel (0) target = $region25
    $region24: #{tpu_custom_call.1} parent=1 // pred_region
      _
    $region25: #{tpu_custom_call.1} parent=1 // pred_fallthru
      _
    %v24 = vld [vmem:[%s1] sm:$0xff]
    %v25 = vld [vmem:[%s1 + $0x8] sm:$0xff]
    %v26 = vld [vmem:[%s1 + $0x10] sm:$0xff]
    %v27 = vld [vmem:[%s1 + $0x18] sm:$0xff]
    %v28 = vld [vmem:[%s2] sm:$0xff]
    %v29 = vld [vmem:[%s2 + $0x8] sm:$0xff]
    %v30 = vld [vmem:[%s2 + $0x10] sm:$0xff]
    %v31 = vld [vmem:[%s2 + $0x18] sm:$0xff]
    %v32 = vsub.s32 %v28, %v24
    %v33 = vsub.s32 %v29, %v25
    %v34 = vsub.s32 %v30, %v26
    %v35 = vsub.s32 %v31, %v27
    %v36 = vcvt.s32.f32 %v32
    %v37 = vcvt.s32.f32 %v33
    %v38 = vcvt.s32.f32 %v34
    %v39 = vcvt.s32.f32 %v35
    %v40 = vrcp.pop %v36
    %v41 = vmul.f32 1.0, %v40
    %v42 = vrcp.pop %v37
    %v43 = vmul.f32 1.0, %v42
    %v44 = vrcp.pop %v38
    %v45 = vmul.f32 1.0, %v44
    %v46 = vrcp.pop %v39
    %v47 = vmul.f32 1.0, %v46
    %v48 = vlaneseq
    %v49 = vand.u32 %v48, 127
    %v50 = vadd.s32 %v49, 128
    %v51 = vadd.s32 %v49, 256
    %v52 = vadd.s32 %v49, 384
    %53 = vset.pattern.permute.xlu0 0
    %54 = vperm.xlu0 %53, %v24
    %v55 = vpop.permute.xlu0 %54
    %56 = vset.pattern.permute.xlu0 0
    %57 = vperm.xlu0 %56, %v25
    %v58 = vpop.permute.xlu0 %57
    %59 = vset.pattern.permute.xlu0 0
    %60 = vperm.xlu0 %59, %v26
    %v61 = vpop.permute.xlu0 %60
    %62 = vset.pattern.permute.xlu0 0
    %63 = vperm.xlu0 %62, %v27
    %v64 = vpop.permute.xlu0 %63
    %vm65 = vcmp.ge.s32.totalorder %v49, %v55
    %vm66 = vcmp.ge.s32.totalorder %v50, %v55
    %vm67 = vcmp.ge.s32.totalorder %v51, %v55
    %vm68 = vcmp.ge.s32.totalorder %v52, %v55
    %vm69 = vcmp.ge.s32.totalorder %v49, %v58
    %vm70 = vcmp.ge.s32.totalorder %v50, %v58
    %vm71 = vcmp.ge.s32.totalorder %v51, %v58
    %vm72 = vcmp.ge.s32.totalorder %v52, %v58
    %vm73 = vcmp.ge.s32.totalorder %v49, %v61
    %vm74 = vcmp.ge.s32.totalorder %v50, %v61
    %vm75 = vcmp.ge.s32.totalorder %v51, %v61
    %vm76 = vcmp.ge.s32.totalorder %v52, %v61
    %vm77 = vcmp.ge.s32.totalorder %v49, %v64
    %vm78 = vcmp.ge.s32.totalorder %v50, %v64
    %vm79 = vcmp.ge.s32.totalorder %v51, %v64
    %vm80 = vcmp.ge.s32.totalorder %v52, %v64
    %81 = vset.pattern.permute.xlu0 0
    %82 = vperm.xlu0 %81, %v28
    %v83 = vpop.permute.xlu0 %82
    %84 = vset.pattern.permute.xlu0 0
    %85 = vperm.xlu0 %84, %v29
    %v86 = vpop.permute.xlu0 %85
    %87 = vset.pattern.permute.xlu0 0
    %88 = vperm.xlu0 %87, %v30
    %v89 = vpop.permute.xlu0 %88
    %90 = vset.pattern.permute.xlu0 0
    %91 = vperm.xlu0 %90, %v31
    %v92 = vpop.permute.xlu0 %91
    %vm93 = vcmp.lt.s32.totalorder %v49, %v83
    %vm94 = vcmp.lt.s32.totalorder %v50, %v83
    %vm95 = vcmp.lt.s32.totalorder %v51, %v83
    %vm96 = vcmp.lt.s32.totalorder %v52, %v83
    %vm97 = vcmp.lt.s32.totalorder %v49, %v86
    %vm98 = vcmp.lt.s32.totalorder %v50, %v86
    %vm99 = vcmp.lt.s32.totalorder %v51, %v86
    %vm100 = vcmp.lt.s32.totalorder %v52, %v86
    %vm101 = vcmp.lt.s32.totalorder %v49, %v89
    %vm102 = vcmp.lt.s32.totalorder %v50, %v89
    %vm103 = vcmp.lt.s32.totalorder %v51, %v89
    %vm104 = vcmp.lt.s32.totalorder %v52, %v89
    %vm105 = vcmp.lt.s32.totalorder %v49, %v92
    %vm106 = vcmp.lt.s32.totalorder %v50, %v92
    %vm107 = vcmp.lt.s32.totalorder %v51, %v92
    %vm108 = vcmp.lt.s32.totalorder %v52, %v92
    %vm109 = vmand %vm65, %vm93
    %vm110 = vmand %vm66, %vm94
    %vm111 = vmand %vm67, %vm95
    %vm112 = vmand %vm68, %vm96
    %vm113 = vmand %vm69, %vm97
    %vm114 = vmand %vm70, %vm98
    %vm115 = vmand %vm71, %vm99
    %vm116 = vmand %vm72, %vm100
    %vm117 = vmand %vm73, %vm101
    %vm118 = vmand %vm74, %vm102
    %vm119 = vmand %vm75, %vm103
    %vm120 = vmand %vm76, %vm104
    %vm121 = vmand %vm77, %vm105
    %vm122 = vmand %vm78, %vm106
    %vm123 = vmand %vm79, %vm107
    %vm124 = vmand %vm80, %vm108
    %126 = vset.pattern.permute.xlu0 0
    %127 = vperm.xlu0 %126, %v41
    %v128 = vpop.permute.xlu0 %127
    %131 = vset.pattern.permute.xlu0 0
    %132 = vperm.xlu0 %131, %v43
    %v133 = vpop.permute.xlu0 %132
    %136 = vset.pattern.permute.xlu0 0
    %137 = vperm.xlu0 %136, %v45
    %v138 = vpop.permute.xlu0 %137
    %141 = vset.pattern.permute.xlu0 0
    %142 = vperm.xlu0 %141, %v47
    %v143 = vpop.permute.xlu0 %142
    %v145 = vsel %vm109, %v128, 0.0
    %v146 = vsel %vm110, %v128, 0.0
    %v147 = vsel %vm111, %v128, 0.0
    %v148 = vsel %vm112, %v128, 0.0
    %v149 = vsel %vm113, %v133, 0.0
    %v150 = vsel %vm114, %v133, 0.0
    %v151 = vsel %vm115, %v133, 0.0
    %v152 = vsel %vm116, %v133, 0.0
    %v153 = vsel %vm117, %v138, 0.0
    %v154 = vsel %vm118, %v138, 0.0
    %v155 = vsel %vm119, %v138, 0.0
    %v156 = vsel %vm120, %v138, 0.0
    %v157 = vsel %vm121, %v143, 0.0
    %v158 = vsel %vm122, %v143, 0.0
    %v159 = vsel %vm123, %v143, 0.0
    %v160 = vsel %vm124, %v143, 0.0
    %v161 = vld [vmem:[%s0] sm:$0xff]
    %v162 = vld [vmem:[%s0 + $0x8] sm:$0xff]
    %v163 = vld [vmem:[%s0 + $0x10] sm:$0xff]
    %v164 = vld [vmem:[%s0 + $0x18] sm:$0xff]
    %v165 = vld [vmem:[%s0 + $0x20] sm:$0xff]
    %v166 = vld [vmem:[%s0 + $0x28] sm:$0xff]
    %v167 = vld [vmem:[%s0 + $0x30] sm:$0xff]
    %v168 = vld [vmem:[%s0 + $0x38] sm:$0xff]
    %v169 = vld [vmem:[%s0 + $0x40] sm:$0xff]
    %v170 = vld [vmem:[%s0 + $0x48] sm:$0xff]
    %v171 = vld [vmem:[%s0 + $0x50] sm:$0xff]
    %v172 = vld [vmem:[%s0 + $0x58] sm:$0xff]
    %v173 = vld [vmem:[%s0 + $0x60] sm:$0xff]
    %v174 = vld [vmem:[%s0 + $0x68] sm:$0xff]
    %v175 = vld [vmem:[%s0 + $0x70] sm:$0xff]
    %v176 = vld [vmem:[%s0 + $0x78] sm:$0xff]
    %v177 = vld [vmem:[%s0 + $0x80] sm:$0xff]
    %v178 = vld [vmem:[%s0 + $0x88] sm:$0xff]
    %v179 = vld [vmem:[%s0 + $0x90] sm:$0xff]
    %v180 = vld [vmem:[%s0 + $0x98] sm:$0xff]
    %v181 = vld [vmem:[%s0 + $0xa0] sm:$0xff]
    %v182 = vld [vmem:[%s0 + $0xa8] sm:$0xff]
    %v183 = vld [vmem:[%s0 + $0xb0] sm:$0xff]
    %v184 = vld [vmem:[%s0 + $0xb8] sm:$0xff]
    %v185 = vld [vmem:[%s0 + $0xc0] sm:$0xff]
    %v186 = vld [vmem:[%s0 + $0xc8] sm:$0xff]
    %v187 = vld [vmem:[%s0 + $0xd0] sm:$0xff]
    %v188 = vld [vmem:[%s0 + $0xd8] sm:$0xff]
    %v189 = vld [vmem:[%s0 + $0xe0] sm:$0xff]
    %v190 = vld [vmem:[%s0 + $0xe8] sm:$0xff]
    %v191 = vld [vmem:[%s0 + $0xf0] sm:$0xff]
    %v192 = vld [vmem:[%s0 + $0xf8] sm:$0xff]
    %v193 = vld [vmem:[%s0 + $0x100] sm:$0xff]
    %v194 = vld [vmem:[%s0 + $0x108] sm:$0xff]
    %v195 = vld [vmem:[%s0 + $0x110] sm:$0xff]
    %v196 = vld [vmem:[%s0 + $0x118] sm:$0xff]
    %v197 = vld [vmem:[%s0 + $0x120] sm:$0xff]
    %v198 = vld [vmem:[%s0 + $0x128] sm:$0xff]
    %v199 = vld [vmem:[%s0 + $0x130] sm:$0xff]
    %v200 = vld [vmem:[%s0 + $0x138] sm:$0xff]
    %v201 = vld [vmem:[%s0 + $0x140] sm:$0xff]
    %v202 = vld [vmem:[%s0 + $0x148] sm:$0xff]
    %v203 = vld [vmem:[%s0 + $0x150] sm:$0xff]
    %v204 = vld [vmem:[%s0 + $0x158] sm:$0xff]
    %v205 = vld [vmem:[%s0 + $0x160] sm:$0xff]
    %v206 = vld [vmem:[%s0 + $0x168] sm:$0xff]
    %v207 = vld [vmem:[%s0 + $0x170] sm:$0xff]
    %v208 = vld [vmem:[%s0 + $0x178] sm:$0xff]
    %v209 = vld [vmem:[%s0 + $0x180] sm:$0xff]
    %v210 = vld [vmem:[%s0 + $0x188] sm:$0xff]
    %v211 = vld [vmem:[%s0 + $0x190] sm:$0xff]
    %v212 = vld [vmem:[%s0 + $0x198] sm:$0xff]
    %v213 = vld [vmem:[%s0 + $0x1a0] sm:$0xff]
    %v214 = vld [vmem:[%s0 + $0x1a8] sm:$0xff]
    %v215 = vld [vmem:[%s0 + $0x1b0] sm:$0xff]
    %v216 = vld [vmem:[%s0 + $0x1b8] sm:$0xff]
    %v217 = vld [vmem:[%s0 + $0x1c0] sm:$0xff]
    %v218 = vld [vmem:[%s0 + $0x1c8] sm:$0xff]
    %v219 = vld [vmem:[%s0 + $0x1d0] sm:$0xff]
    %v220 = vld [vmem:[%s0 + $0x1d8] sm:$0xff]
    %v221 = vld [vmem:[%s0 + $0x1e0] sm:$0xff]
    %v222 = vld [vmem:[%s0 + $0x1e8] sm:$0xff]
    %v223 = vld [vmem:[%s0 + $0x1f0] sm:$0xff]
    %v224 = vld [vmem:[%s0 + $0x1f8] sm:$0xff]
    %225 = vmatprep.subr.mxu0 0.0
    %226 = vmatpush1.msra.mxu0 %v161
    %227 = vmatprep.subr.mxu0 0.0
    %228 = vmatpush1.msra.mxu0 %v162
    %229 = vmatprep.subr.mxu0 0.0
    %230 = vmatpush1.msra.mxu0 %v163
    %231 = vmatprep.subr.mxu0 0.0
    %232 = vmatpush1.msra.mxu0 %v164
    %233 = vmatprep.subr.mxu0 0.0
    %234 = vmatpush1.msra.mxu0 %v165
    %235 = vmatprep.subr.mxu0 0.0
    %236 = vmatpush1.msra.mxu0 %v166
    %237 = vmatprep.subr.mxu0 0.0
    %238 = vmatpush1.msra.mxu0 %v167
    %239 = vmatprep.subr.mxu0 0.0
    %240 = vmatpush1.msra.mxu0 %v168
    %241 = vmatprep.subr.mxu0 0.0
    %242 = vmatpush1.msra.mxu0 %v169
    %243 = vmatprep.subr.mxu0 0.0
    %244 = vmatpush1.msra.mxu0 %v170
    %245 = vmatprep.subr.mxu0 0.0
    %246 = vmatpush1.msra.mxu0 %v171
    %247 = vmatprep.subr.mxu0 0.0
    %248 = vmatpush1.msra.mxu0 %v172
    %249 = vmatprep.subr.mxu0 0.0
    %250 = vmatpush1.msra.mxu0 %v173
    %251 = vmatprep.subr.mxu0 0.0
    %252 = vmatpush1.msra.mxu0 %v174
    %253 = vmatprep.subr.mxu0 0.0
    %254 = vmatpush1.msra.mxu0 %v175
    %255 = vmatprep.subr.mxu0 0.0
    %256 = vmatpush1.msra.mxu0 %v176
    %257 = vmatprep.subr.mxu0 0.0
    %258 = vmatpush1.msra.mxu0 %v177
    %259 = vmatprep.subr.mxu0 0.0
    %260 = vmatpush1.msra.mxu0 %v178
    %261 = vmatprep.subr.mxu0 0.0
    %262 = vmatpush1.msra.mxu0 %v179
    %263 = vmatprep.subr.mxu0 0.0
    %264 = vmatpush1.msra.mxu0 %v180
    %265 = vmatprep.subr.mxu0 0.0
    %266 = vmatpush1.msra.mxu0 %v181
    %267 = vmatprep.subr.mxu0 0.0
    %268 = vmatpush1.msra.mxu0 %v182
    %269 = vmatprep.subr.mxu0 0.0
    %270 = vmatpush1.msra.mxu0 %v183
    %271 = vmatprep.subr.mxu0 0.0
    %272 = vmatpush1.msra.mxu0 %v184
    %273 = vmatprep.subr.mxu0 0.0
    %274 = vmatpush1.msra.mxu0 %v185
    %275 = vmatprep.subr.mxu0 0.0
    %276 = vmatpush1.msra.mxu0 %v186
    %277 = vmatprep.subr.mxu0 0.0
    %278 = vmatpush1.msra.mxu0 %v187
    %279 = vmatprep.subr.mxu0 0.0
    %280 = vmatpush1.msra.mxu0 %v188
    %281 = vmatprep.subr.mxu0 0.0
    %282 = vmatpush1.msra.mxu0 %v189
    %283 = vmatprep.subr.mxu0 0.0
    %284 = vmatpush1.msra.mxu0 %v190
    %285 = vmatprep.subr.mxu0 0.0
    %286 = vmatpush1.msra.mxu0 %v191
    %287 = vmatprep.subr.mxu0 0.0
    %288 = vmatpush1.msra.mxu0 %v192
    %289 = vmatprep.mubr.f32.mxu0 %v146
    %290 = vmatmul.mubr.f32.gmra.mrb[0].mxu0 %v145
    %v291 = vpop.f32.mrb[0].mxu0
    %v292 = vadd.f32 0.0, %v291
    %v293 = vpop.f32.mrb[0].mxu0
    %294 = vmatprep.mubr.f32.mxu0 %v150
    %295 = vmatmul.mubr.f32.gmra.mrb[0].mxu0 %v149
    %v296 = vpop.f32.mrb[0].mxu0
    %v297 = vadd.f32 0.0, %v296
    %v298 = vpop.f32.mrb[0].mxu0
    %299 = vmatprep.mubr.f32.mxu0 %v154
    %300 = vmatmul.mubr.f32.gmra.mrb[0].mxu0 %v153
    %v301 = vpop.f32.mrb[0].mxu0
    %v302 = vadd.f32 0.0, %v301
    %v303 = vpop.f32.mrb[0].mxu0
    %304 = vmatprep.mubr.f32.mxu0 %v158
    %305 = vmatmul.mubr.f32.gmra.mrb[0].mxu0 %v157
    %v306 = vpop.f32.mrb[0].mxu0
    %v307 = vadd.f32 0.0, %v306
    %v308 = vpop.f32.mrb[0].mxu0
    %309 = vdwg.mxu0
    %310 = vmatprep.subr.mxu0 0.0
    %311 = vmatpush1.msra.mxu0 %v193
    %312 = vmatprep.subr.mxu0 0.0
    %313 = vmatpush1.msra.mxu0 %v194
    %314 = vmatprep.subr.mxu0 0.0
    %315 = vmatpush1.msra.mxu0 %v195
    %316 = vmatprep.subr.mxu0 0.0
    %317 = vmatpush1.msra.mxu0 %v196
    %318 = vmatprep.subr.mxu0 0.0
    %319 = vmatpush1.msra.mxu0 %v197
    %320 = vmatprep.subr.mxu0 0.0
    %321 = vmatpush1.msra.mxu0 %v198
    %322 = vmatprep.subr.mxu0 0.0
    %323 = vmatpush1.msra.mxu0 %v199
    %324 = vmatprep.subr.mxu0 0.0
    %325 = vmatpush1.msra.mxu0 %v200
    %326 = vmatprep.subr.mxu0 0.0
    %327 = vmatpush1.msra.mxu0 %v201
    %328 = vmatprep.subr.mxu0 0.0
    %329 = vmatpush1.msra.mxu0 %v202
    %330 = vmatprep.subr.mxu0 0.0
    %331 = vmatpush1.msra.mxu0 %v203
    %332 = vmatprep.subr.mxu0 0.0
    %333 = vmatpush1.msra.mxu0 %v204
    %334 = vmatprep.subr.mxu0 0.0
    %335 = vmatpush1.msra.mxu0 %v205
    %336 = vmatprep.subr.mxu0 0.0
    %337 = vmatpush1.msra.mxu0 %v206
    %338 = vmatprep.subr.mxu0 0.0
    %339 = vmatpush1.msra.mxu0 %v207
    %340 = vmatprep.subr.mxu0 0.0
    %341 = vmatpush1.msra.mxu0 %v208
    %342 = vmatprep.subr.mxu0 0.0
    %343 = vmatpush1.msra.mxu0 %v209
    %344 = vmatprep.subr.mxu0 0.0
    %345 = vmatpush1.msra.mxu0 %v210
    %346 = vmatprep.subr.mxu0 0.0
    %347 = vmatpush1.msra.mxu0 %v211
    %348 = vmatprep.subr.mxu0 0.0
    %349 = vmatpush1.msra.mxu0 %v212
    %350 = vmatprep.subr.mxu0 0.0
    %351 = vmatpush1.msra.mxu0 %v213
    %352 = vmatprep.subr.mxu0 0.0
    %353 = vmatpush1.msra.mxu0 %v214
    %354 = vmatprep.subr.mxu0 0.0
    %355 = vmatpush1.msra.mxu0 %v215
    %356 = vmatprep.subr.mxu0 0.0
    %357 = vmatpush1.msra.mxu0 %v216
    %358 = vmatprep.subr.mxu0 0.0
    %359 = vmatpush1.msra.mxu0 %v217
    %360 = vmatprep.subr.mxu0 0.0
    %361 = vmatpush1.msra.mxu0 %v218
    %362 = vmatprep.subr.mxu0 0.0
    %363 = vmatpush1.msra.mxu0 %v219
    %364 = vmatprep.subr.mxu0 0.0
    %365 = vmatpush1.msra.mxu0 %v220
    %366 = vmatprep.subr.mxu0 0.0
    %367 = vmatpush1.msra.mxu0 %v221
    %368 = vmatprep.subr.mxu0 0.0
    %369 = vmatpush1.msra.mxu0 %v222
    %370 = vmatprep.subr.mxu0 0.0
    %371 = vmatpush1.msra.mxu0 %v223
    %372 = vmatprep.subr.mxu0 0.0
    %373 = vmatpush1.msra.mxu0 %v224
    %374 = vmatprep.mubr.f32.mxu0 %v148
    %375 = vmatmul.mubr.f32.gmra.mrb[0].mxu0 %v147
    %v376 = vpop.f32.mrb[0].mxu0
    %v377 = vadd.f32 %v292, %v376
    %v378 = vpop.f32.mrb[0].mxu0
    %379 = vmatprep.mubr.f32.mxu0 %v152
    %380 = vmatmul.mubr.f32.gmra.mrb[0].mxu0 %v151
    %v381 = vpop.f32.mrb[0].mxu0
    %v382 = vadd.f32 %v297, %v381
    %v383 = vpop.f32.mrb[0].mxu0
    %384 = vmatprep.mubr.f32.mxu0 %v156
    %385 = vmatmul.mubr.f32.gmra.mrb[0].mxu0 %v155
    %v386 = vpop.f32.mrb[0].mxu0
    %v387 = vadd.f32 %v302, %v386
    %v388 = vpop.f32.mrb[0].mxu0
    %389 = vmatprep.mubr.f32.mxu0 %v160
    %390 = vmatmul.mubr.f32.gmra.mrb[0].mxu0 %v159
    %v391 = vpop.f32.mrb[0].mxu0
    %v392 = vadd.f32 %v307, %v391
    %v393 = vpop.f32.mrb[0].mxu0
    %394 = vdwg.mxu0
    %v395 = vld [vmem:[%s3] sm:$0xff]
    %v396 = vld [vmem:[%s3 + $0x8] sm:$0xff]
    %v397 = vld [vmem:[%s3 + $0x10] sm:$0xff]
    %v398 = vld [vmem:[%s3 + $0x18] sm:$0xff]
    %v399 = vld [vmem:[%s3 + $0x20] sm:$0xff]
    %v400 = vld [vmem:[%s3 + $0x28] sm:$0xff]
    %v401 = vld [vmem:[%s3 + $0x30] sm:$0xff]
    %v402 = vld [vmem:[%s3 + $0x38] sm:$0xff]
    %v403 = vld [vmem:[%s4] sm:$0xff]
    %v404 = vld [vmem:[%s4 + $0x8] sm:$0xff]
    %v405 = vld [vmem:[%s4 + $0x10] sm:$0xff]
    %v406 = vld [vmem:[%s4 + $0x18] sm:$0xff]
    %v407 = vld [vmem:[%s4 + $0x20] sm:$0xff]
    %v408 = vld [vmem:[%s4 + $0x28] sm:$0xff]
    %v409 = vld [vmem:[%s4 + $0x30] sm:$0xff]
    %v410 = vld [vmem:[%s4 + $0x38] sm:$0xff]
    %vm411 = vcmask 523264
    %v413 = vsel %vm411, %v387, 0
    %v416 = vsel %vm411, %v392, 0
    %418 = vmatprep.subr.mxu0 0.0
    %419 = vmatpush1.msra.mxu0 %v403
    %420 = vmatprep.subr.mxu0 0.0
    %421 = vmatpush1.msra.mxu0 %v404
    %422 = vmatprep.subr.mxu0 0.0
    %423 = vmatpush1.msra.mxu0 %v405
    %424 = vmatprep.subr.mxu0 0.0
    %425 = vmatpush1.msra.mxu0 %v406
    %426 = vmatprep.subr.mxu0 0.0
    %427 = vmatpush1.msra.mxu0 %v407
    %428 = vmatprep.subr.mxu0 0.0
    %429 = vmatpush1.msra.mxu0 %v408
    %430 = vmatprep.subr.mxu0 0.0
    %431 = vmatpush1.msra.mxu0 %v409
    %432 = vmatprep.subr.mxu0 0.0
    %433 = vmatpush1.msra.mxu0 %v410
    %434 = vmatprep.subr.mxu0 0.0
    %435 = vmatpush1.msra.mxu0 0.0
    %436 = vmatprep.subr.mxu0 0.0
    %437 = vmatpush1.msra.mxu0 0.0
    %438 = vmatprep.subr.mxu0 0.0
    %439 = vmatpush1.msra.mxu0 0.0
    %440 = vmatprep.subr.mxu0 0.0
    %441 = vmatpush1.msra.mxu0 0.0
    %442 = vmatprep.subr.mxu0 0.0
    %443 = vmatpush1.msra.mxu0 0.0
    %444 = vmatprep.subr.mxu0 0.0
    %445 = vmatpush1.msra.mxu0 0.0
    %446 = vmatprep.subr.mxu0 0.0
    %447 = vmatpush1.msra.mxu0 0.0
    %448 = vmatprep.subr.mxu0 0.0
    %449 = vmatpush1.msra.mxu0 0.0
    %450 = vmatprep.subr.mxu0 0.0
    %451 = vmatpush1.msra.mxu0 0.0
    %452 = vmatprep.subr.mxu0 0.0
    %453 = vmatpush1.msra.mxu0 0.0
    %454 = vmatprep.subr.mxu0 0.0
    %455 = vmatpush1.msra.mxu0 0.0
    %456 = vmatprep.subr.mxu0 0.0
    %457 = vmatpush1.msra.mxu0 0.0
    %458 = vmatprep.subr.mxu0 0.0
    %459 = vmatpush1.msra.mxu0 0.0
    %460 = vmatprep.subr.mxu0 0.0
    %461 = vmatpush1.msra.mxu0 0.0
    %462 = vmatprep.subr.mxu0 0.0
    %463 = vmatpush1.msra.mxu0 0.0
    %464 = vmatprep.subr.mxu0 0.0
    %465 = vmatpush1.msra.mxu0 0.0
    %466 = vmatprep.subr.mxu0 0.0
    %467 = vmatpush1.msra.mxu0 0.0
    %468 = vmatprep.subr.mxu0 0.0
    %469 = vmatpush1.msra.mxu0 0.0
    %470 = vmatprep.subr.mxu0 0.0
    %471 = vmatpush1.msra.mxu0 0.0
    %472 = vmatprep.subr.mxu0 0.0
    %473 = vmatpush1.msra.mxu0 0.0
    %474 = vmatprep.subr.mxu0 0.0
    %475 = vmatpush1.msra.mxu0 0.0
    %476 = vmatprep.subr.mxu0 0.0
    %477 = vmatpush1.msra.mxu0 0.0
    %478 = vmatprep.subr.mxu0 0.0
    %479 = vmatpush1.msra.mxu0 0.0
    %480 = vmatprep.subr.mxu0 0.0
    %481 = vmatpush1.msra.mxu0 0.0
    %482 = vmatprep.mubr.f32.mxu0 0.0
    %483 = vmatmul.mubr.f32.gmra.mrb[0].mxu0 %v413
    %v484 = vpop.f32.mrb[0].mxu0
    %v485 = vadd.f32 0.0, %v484
    %v486 = vpop.f32.mrb[0].mxu0
    %487 = vmatprep.mubr.f32.mxu0 0.0
    %488 = vmatmul.mubr.f32.gmra.mrb[0].mxu0 %v416
    %v489 = vpop.f32.mrb[0].mxu0
    %v490 = vadd.f32 0.0, %v489
    %v491 = vpop.f32.mrb[0].mxu0
    %492 = vdwg.mxu0
    %v494 = vsel %vm411, %v377, 0
    %v497 = vsel %vm411, %v382, 0
    %499 = vmatprep.subr.mxu0 0.0
    %500 = vmatpush1.msra.mxu0 %v395
    %501 = vmatprep.subr.mxu0 0.0
    %502 = vmatpush1.msra.mxu0 %v396
    %503 = vmatprep.subr.mxu0 0.0
    %504 = vmatpush1.msra.mxu0 %v397
    %505 = vmatprep.subr.mxu0 0.0
    %506 = vmatpush1.msra.mxu0 %v398
    %507 = vmatprep.subr.mxu0 0.0
    %508 = vmatpush1.msra.mxu0 %v399
    %509 = vmatprep.subr.mxu0 0.0
    %510 = vmatpush1.msra.mxu0 %v400
    %511 = vmatprep.subr.mxu0 0.0
    %512 = vmatpush1.msra.mxu0 %v401
    %513 = vmatprep.subr.mxu0 0.0
    %514 = vmatpush1.msra.mxu0 %v402
    %515 = vmatprep.subr.mxu0 0.0
    %516 = vmatpush1.msra.mxu0 0.0
    %517 = vmatprep.subr.mxu0 0.0
    %518 = vmatpush1.msra.mxu0 0.0
    %519 = vmatprep.subr.mxu0 0.0
    %520 = vmatpush1.msra.mxu0 0.0
    %521 = vmatprep.subr.mxu0 0.0
    %522 = vmatpush1.msra.mxu0 0.0
    %523 = vmatprep.subr.mxu0 0.0
    %524 = vmatpush1.msra.mxu0 0.0
    %525 = vmatprep.subr.mxu0 0.0
    %526 = vmatpush1.msra.mxu0 0.0
    %527 = vmatprep.subr.mxu0 0.0
    %528 = vmatpush1.msra.mxu0 0.0
    %529 = vmatprep.subr.mxu0 0.0
    %530 = vmatpush1.msra.mxu0 0.0
    %531 = vmatprep.subr.mxu0 0.0
    %532 = vmatpush1.msra.mxu0 0.0
    %533 = vmatprep.subr.mxu0 0.0
    %534 = vmatpush1.msra.mxu0 0.0
    %535 = vmatprep.subr.mxu0 0.0
    %536 = vmatpush1.msra.mxu0 0.0
    %537 = vmatprep.subr.mxu0 0.0
    %538 = vmatpush1.msra.mxu0 0.0
    %539 = vmatprep.subr.mxu0 0.0
    %540 = vmatpush1.msra.mxu0 0.0
    %541 = vmatprep.subr.mxu0 0.0
    %542 = vmatpush1.msra.mxu0 0.0
    %543 = vmatprep.subr.mxu0 0.0
    %544 = vmatpush1.msra.mxu0 0.0
    %545 = vmatprep.subr.mxu0 0.0
    %546 = vmatpush1.msra.mxu0 0.0
    %547 = vmatprep.subr.mxu0 0.0
    %548 = vmatpush1.msra.mxu0 0.0
    %549 = vmatprep.subr.mxu0 0.0
    %550 = vmatpush1.msra.mxu0 0.0
    %551 = vmatprep.subr.mxu0 0.0
    %552 = vmatpush1.msra.mxu0 0.0
    %553 = vmatprep.subr.mxu0 0.0
    %554 = vmatpush1.msra.mxu0 0.0
    %555 = vmatprep.subr.mxu0 0.0
    %556 = vmatpush1.msra.mxu0 0.0
    %557 = vmatprep.subr.mxu0 0.0
    %558 = vmatpush1.msra.mxu0 0.0
    %559 = vmatprep.subr.mxu0 0.0
    %560 = vmatpush1.msra.mxu0 0.0
    %561 = vmatprep.subr.mxu0 0.0
    %562 = vmatpush1.msra.mxu0 0.0
    %563 = vmatprep.mubr.f32.mxu0 0.0
    %564 = vmatmul.mubr.f32.gmra.mrb[0].mxu0 %v494
    %v565 = vpop.f32.mrb[0].mxu0
    %v566 = vadd.f32 %v485, %v565
    %v567 = vpop.f32.mrb[0].mxu0
    %568 = vmatprep.mubr.f32.mxu0 0.0
    %569 = vmatmul.mubr.f32.gmra.mrb[0].mxu0 %v497
    %v570 = vpop.f32.mrb[0].mxu0
    %v571 = vadd.f32 %v490, %v570
    %v572 = vpop.f32.mrb[0].mxu0
    %573 = vdwg.mxu0
    %v574 = vld [vmem:[%s5] sm:$0x1]
    %v576 = vlaneseq
    %v577 = vshrl.u32 %v576, 7
    %v578 = vsub.s32 0, %v577
    %v579 = vrot.slane %v574, %v578
    %v581 = vadd.f32 %v566, %v579
    %v582 = vadd.f32 %v571, %v579
    %583 = vst [vmem:[#allocation2] sm:$0xff] %v581
    %584 = vst [vmem:[#allocation2 + $0x8] sm:$0xff] %v582
    // Predicated region
    $region26: #{tpu_custom_call.1} parent=1 // pred_check
      _
    $region27: #{tpu_custom_call.1} parent=1 // pred_check_branch
      %586 = sbr.rel (0) target = $region29
    $region28: #{tpu_custom_call.1} parent=1 // pred_region
      %s588 = ssub.s32 256, 256
      %589 = vsyncadd [#allocation3], %s588
      %s590 = sshll.u32 [#allocation2], 4
      %s591 = int_to_ptr.vmem [resolvable:$true] %s590
      %596 = dma.vmem_to_hbm [thread:$0]  %s591, 256, %s6, [#allocation3], 128, 128, 8
    $region29: #{tpu_custom_call.1} parent=1 // pred_fallthru
      _
    // Predicated region
    $region30: #{tpu_custom_call.1} parent=1 // pred_check
      _
    $region31: #{tpu_custom_call.1} parent=1 // pred_check_branch
      %598 = sbr.rel (0) target = $region33
    $region32: #{tpu_custom_call.1} parent=1 // pred_region
      %599 = dma.done [#allocation3], 256
    $region33: #{tpu_custom_call.1} parent=1 // pred_fallthru
      _
    %600 = vsyncpa [#allocation3], 1

</llo_original>
